<compile_context>
chip_gen: v7x
topology: tpu7x:2x2x1
jax: 0.10.0
libtpu: 0.0.40
codegen_flags: <defaults>
</compile_context>

<pallas_src>
import jax
import jax.numpy as jnp
from jax import lax
from jax.experimental import pallas as pl
from jax.experimental.pallas import tpu as pltpu


def _round_up(v, m):
    return (v + m - 1) // m * m


def _cdiv(a, b):
    return -(-a // b)


# ---------------------------------------------------------------------------
# Fused kernel: phase 0 accumulates weighted = x @ W1; phase 1 emits
#               output = weighted @ W2^T + b, one (B, tile) slab per step.
# ---------------------------------------------------------------------------
def _fused_kernel(x_ref, w1_ref, w2_ref, b_ref, o_ref, acc_ref):
    p = pl.program_id(0)   # 0 -> accumulate weighted ; 1 -> produce output slabs
    t = pl.program_id(1)   # M-slab index

    @pl.when(jnp.logical_and(p == 0, t == 0))
    def _init():
        acc_ref[...] = jnp.zeros_like(acc_ref)

    @pl.when(p == 0)
    def _accumulate():
        # bf16 x bf16 -> f32 accumulation on the MXU
        acc_ref[...] += jnp.dot(x_ref[...], w1_ref[...],
                                preferred_element_type=jnp.float32)

    @pl.when(p == 1)
    def _predict():
        # NT contraction: (B, H) x (tile, H) -> (B, tile); bias add in f32.
        wtd = acc_ref[...].astype(jnp.bfloat16)
        prod = lax.dot_general(wtd, w2_ref[...],
                               dimension_numbers=(((1,), (1,)), ((), ())),
                               preferred_element_type=jnp.float32)
        o_ref[...] = (prod + b_ref[...]).astype(o_ref.dtype)


# ---------------------------------------------------------------------------
# One-time parameter preparation (module "init"): cast to bf16, pad to the tile
# grid once so the hot path never re-pads (no extra HBM copy per call).
# ---------------------------------------------------------------------------
def prepare_review_weighted_recommender_params(movie_rep_matrix, w2, b2, *,
                                               target_tile_m=2048):
    M, H = movie_rep_matrix.shape
    assert w2.shape == (M, H) and b2.shape == (M,)

    m_128 = _round_up(M, 128)
    n_tiles = max(1, _cdiv(m_128, target_tile_m))
    tile_m = _round_up(_cdiv(m_128, n_tiles), 128)     # multiple of 128, close to target
    m_pad = n_tiles * tile_m                           # small overshoot only (<= n_tiles*128 rows)

    pad = ((0, m_pad - M), (0, 0))
    w1_p = jnp.pad(movie_rep_matrix.astype(jnp.bfloat16), pad)
    w2_p = jnp.pad(w2.astype(jnp.bfloat16), pad)
    b2_p = jnp.pad(b2.astype(jnp.float32), (0, m_pad - M)).reshape(1, m_pad)

    return {
        "w1": w1_p, "w2": w2_p, "b2": b2_p,
        "n_movies": M, "hidden": H,
        "tile_m": tile_m, "n_tiles": n_tiles, "m_padded": m_pad,
    }


# ---------------------------------------------------------------------------
# Forward pass
# ---------------------------------------------------------------------------
def review_weighted_recommender_fwd(x, params):
    """
    x: (B, n_movies) float32 input distribution over movies.
    params: output of prepare_review_weighted_recommender_params.
    returns: (B, n_movies) float32.
    """
    w1, w2, b2 = params["w1"], params["w2"], params["b2"]
    M, H = params["n_movies"], params["hidden"]
    tile_m, nt, Mk = params["tile_m"], params["n_tiles"], params["m_padded"]

    B = x.shape[0]
    assert x.shape[1] == M

    # Only the tiny (B, M) input is padded per call (weights were padded at init).
    x_b = x.astype(jnp.bfloat16)
    if Mk != M:
        x_b = jnp.pad(x_b, ((0, 0), (0, Mk - M)))

    nt_last = nt - 1

    # VMEM budget: double-buffered bf16 weight slabs dominate; set the scoped limit
    # explicitly so aggressive tiles still work on v5e (16 MiB default).
    vmem_need = (2 * tile_m * H * 2) * 2 \
        + 2 * B * tile_m * 2 \
        + 2 * tile_m * 4 \
        + 2 * B * tile_m * 4 \
        + B * H * 4
    vmem_limit = int(min(max(vmem_need * 5 // 4 + (1 << 20), 32 * (1 << 20)),
                         64 * (1 << 20)))

    out = pl.pallas_call(
        _fused_kernel,
        out_shape=jax.ShapeDtypeStruct((B, Mk), jnp.float32),
        grid_spec=pltpu.PrefetchScalarGridSpec(
            num_scalar_prefetch=0,
            grid=(2, nt),
            in_specs=[
                # x K-slab: walks slabs in phase 0, pinned to the last fetched slab in
                # phase 1 (same block index => Pallas issues no dead DMA).
                pl.BlockSpec((B, tile_m),
                             lambda p, t: (0, t * (1 - p) + nt_last * p)),
                # W1 row slab (contiguous rows): same pinning.
                pl.BlockSpec((tile_m, H),
                             lambda p, t: (t * (1 - p) + nt_last * p, 0)),
                # W2 row slab: pinned to block 0 during phase 0 (acts as a prefetch),
                # walks slabs in phase 1.
                pl.BlockSpec((tile_m, H), lambda p, t: (t * p, 0)),
                # bias slab (f32).
                pl.BlockSpec((1, tile_m), lambda p, t: (0, t * p)),
            ],
            # Output pinned to slab 0 during phase 0 (never written back there),
            # walks slabs in phase 1. Lane-dense (tile_m multiple of 128).
            out_specs=pl.BlockSpec((B, tile_m), lambda p, t: (0, t * p)),
            scratch_shapes=[pltpu.VMEM((B, H), jnp.float32)],
        ),
        compiler_params=pltpu.CompilerParams(
            dimension_semantics=("arbitrary", "arbitrary"),
            vmem_limit_bytes=vmem_limit),
        cost_estimate=pl.CostEstimate(
            flops=4 * B * Mk * H,
            transcendentals=0,
            bytes_accessed=2 * Mk * H * 2 + B * Mk * 2 + Mk * 4 + B * Mk * 4),
    )(x_b, w1, w2, b2)

    if Mk != M:
        out = out[:, :M]
    return out


if __name__ == "__main__":
    # Small, deterministic synthetic setup consistent with the module:
    #   n_movies = 256, conversation_encoder_hidden_size = 128, batch = 2
    B = 2
    n_movies = 256
    hidden = 128   # params['conversation_encoder_hidden_size']

    key = jax.random.PRNGKey(0)
    k_x, k_rep, k_w2, k_b2 = jax.random.split(key, 4)

    x = jax.random.uniform(k_x, (B, n_movies), dtype=jnp.float32)
    movie_rep_matrix = jax.random.normal(k_rep, (n_movies, hidden), dtype=jnp.float32) * 0.1
    w2 = jax.random.normal(k_w2, (n_movies, hidden), dtype=jnp.float32) * 0.05
    b2 = jax.random.normal(k_b2, (n_movies,), dtype=jnp.float32) * 0.01

    params = prepare_review_weighted_recommender_params(movie_rep_matrix, w2, b2)
    out = review_weighted_recommender_fwd(x, params)
    out = jax.block_until_ready(out)

    # sanity check against pure-JAX reference (f32); kernel streams bf16 with f32
    # accumulation, so use a correspondingly loose tolerance.
    ref = (x @ movie_rep_matrix) @ w2.T + b2[None, :]
    assert out.shape == (B, n_movies)
    assert jnp.allclose(out, ref, atol=3e-2, rtol=3e-2)

    print("KERNEL_OK")
</pallas_src>

<mosaic_0001>
module attributes {stable_mosaic.version = 11 : i64} {
  func.func @_fused_kernel(%arg0: i32, %arg1: i32, %arg2: memref<2x256xbf16, #tpu.memory_space<vmem>>, %arg3: memref<256x128xbf16, #tpu.memory_space<vmem>>, %arg4: memref<256x128xbf16, #tpu.memory_space<vmem>>, %arg5: memref<1x256xf32, #tpu.memory_space<vmem>>, %arg6: memref<2x256xf32, #tpu.memory_space<vmem>>, %arg7: memref<2x128xf32, #tpu.memory_space<vmem>>) attributes {dimension_semantics = [#tpu.dimension_semantics<arbitrary>, #tpu.dimension_semantics<arbitrary>], iteration_bounds = array<i64: 2, 1>, scalar_prefetch = 0 : i64, scratch_operands = 1 : i64, tpu.core_type = #tpu.core_type<tc>, window_params = [{transform_indices = @transform_0, window_bounds = array<i64: 2, 256>}, {transform_indices = @transform_1, window_bounds = array<i64: 256, 128>}, {transform_indices = @transform_2, window_bounds = array<i64: 256, 128>}, {transform_indices = @transform_3, window_bounds = array<i64: 1, 256>}, {transform_indices = @transform_4, window_bounds = array<i64: 2, 256>}]} {
    %c0_i32 = arith.constant 0 : i32
    %0 = arith.cmpi eq, %arg0, %c0_i32 : i32
    %c0_i32_0 = arith.constant 0 : i32
    %1 = arith.cmpi eq, %arg1, %c0_i32_0 : i32
    %2 = arith.andi %0, %1 : i1
    %3 = arith.extui %2 : i1 to i32
    %c0_i32_1 = arith.constant 0 : i32
    %4 = arith.cmpi ne, %3, %c0_i32_1 : i32
    scf.if %4 {
      %cst = arith.constant 0.000000e+00 : f32
      %11 = vector.broadcast %cst : f32 to vector<2x128xf32>
      %c0 = arith.constant 0 : index
      %c0_5 = arith.constant 0 : index
      %12 = vector.load %arg7[%c0, %c0_5] : memref<2x128xf32, #tpu.memory_space<vmem>>, vector<2x128xf32>
      tpu.vector_store %arg7[%c0, %c0_5], %11 {strides = array<i32>} : memref<2x128xf32, #tpu.memory_space<vmem>>, vector<2x128xf32>,
    } else {
    }
    %c0_i32_2 = arith.constant 0 : i32
    %5 = arith.cmpi eq, %arg0, %c0_i32_2 : i32
    %6 = arith.extui %5 : i1 to i32
    %c0_i32_3 = arith.constant 0 : i32
    %7 = arith.cmpi ne, %6, %c0_i32_3 : i32
    scf.if %7 {
      %c0 = arith.constant 0 : index
      %c0_5 = arith.constant 0 : index
      %11 = vector.load %arg7[%c0, %c0_5] : memref<2x128xf32, #tpu.memory_space<vmem>>, vector<2x128xf32>
      %c0_6 = arith.constant 0 : index
      %c0_7 = arith.constant 0 : index
      %12 = vector.load %arg2[%c0_6, %c0_7] : memref<2x256xbf16, #tpu.memory_space<vmem>>, vector<2x256xbf16>
      %c0_8 = arith.constant 0 : index
      %c0_9 = arith.constant 0 : index
      %13 = vector.load %arg3[%c0_8, %c0_9] : memref<256x128xbf16, #tpu.memory_space<vmem>>, vector<256x128xbf16>
      %cst = arith.constant dense<0.000000e+00> : vector<2x128xf32>
      %14 = tpu.matmul %12, %13, %cst {dimension_numbers = #tpu.dot_dimension_numbers<[1], [0], [0], [1], [0, 0, 1, 1], [], []>} : vector<2x256xbf16>, vector<256x128xbf16>, vector<2x128xf32> -> vector<2x128xf32>
      %15 = arith.addf %11, %14 : vector<2x128xf32>
      %c0_10 = arith.constant 0 : index
      %c0_11 = arith.constant 0 : index
      %16 = vector.load %arg7[%c0_10, %c0_11] : memref<2x128xf32, #tpu.memory_space<vmem>>, vector<2x128xf32>
      tpu.vector_store %arg7[%c0_10, %c0_11], %15 {strides = array<i32>} : memref<2x128xf32, #tpu.memory_space<vmem>>, vector<2x128xf32>,
    } else {
    }
    %c1_i32 = arith.constant 1 : i32
    %8 = arith.cmpi eq, %arg0, %c1_i32 : i32
    %9 = arith.extui %8 : i1 to i32
    %c0_i32_4 = arith.constant 0 : i32
    %10 = arith.cmpi ne, %9, %c0_i32_4 : i32
    scf.if %10 {
      %c0 = arith.constant 0 : index
      %c0_5 = arith.constant 0 : index
      %11 = vector.load %arg7[%c0, %c0_5] : memref<2x128xf32, #tpu.memory_space<vmem>>, vector<2x128xf32>
      %12 = arith.truncf %11 : vector<2x128xf32> to vector<2x128xbf16>
      %c0_6 = arith.constant 0 : index
      %c0_7 = arith.constant 0 : index
      %13 = vector.load %arg4[%c0_6, %c0_7] : memref<256x128xbf16, #tpu.memory_space<vmem>>, vector<256x128xbf16>
      %cst = arith.constant dense<0.000000e+00> : vector<2x256xf32>
      %14 = tpu.matmul %12, %13, %cst {dimension_numbers = #tpu.dot_dimension_numbers<[1], [1], [0], [0], [0, 0, 1, 0], [], []>} : vector<2x128xbf16>, vector<256x128xbf16>, vector<2x256xf32> -> vector<2x256xf32>
      %c0_8 = arith.constant 0 : index
      %c0_9 = arith.constant 0 : index
      %15 = vector.load %arg5[%c0_8, %c0_9] : memref<1x256xf32, #tpu.memory_space<vmem>>, vector<1x256xf32>
      %16 = vector.broadcast %15 : vector<1x256xf32> to vector<2x256xf32>
      %17 = arith.addf %14, %16 : vector<2x256xf32>
      %c0_10 = arith.constant 0 : index
      %c0_11 = arith.constant 0 : index
      %18 = vector.load %arg6[%c0_10, %c0_11] : memref<2x256xf32, #tpu.memory_space<vmem>>, vector<2x256xf32>
      tpu.vector_store %arg6[%c0_10, %c0_11], %17 {strides = array<i32>} : memref<2x256xf32, #tpu.memory_space<vmem>>, vector<2x256xf32>,
    } else {
    }
    return
  }
  func.func @transform_0(%arg0: i32, %arg1: i32) -> (i32, i32) {
    %c1_i32 = arith.constant 1 : i32
    %0 = arith.subi %c1_i32, %arg0 : i32
    %1 = arith.muli %arg1, %0 : i32
    %c0_i32 = arith.constant 0 : i32
    %2 = arith.muli %c0_i32, %arg0 : i32
    %3 = arith.addi %1, %2 : i32
    %c0_i32_0 = arith.constant 0 : i32
    %c0_i32_1 = arith.constant 0 : i32
    return %c0_i32_0, %3 : i32, i32
  }
  func.func @transform_1(%arg0: i32, %arg1: i32) -> (i32, i32) {
    %c1_i32 = arith.constant 1 : i32
    %0 = arith.subi %c1_i32, %arg0 : i32
    %1 = arith.muli %arg1, %0 : i32
    %c0_i32 = arith.constant 0 : i32
    %2 = arith.muli %c0_i32, %arg0 : i32
    %3 = arith.addi %1, %2 : i32
    %c0_i32_0 = arith.constant 0 : i32
    %c0_i32_1 = arith.constant 0 : i32
    return %3, %c0_i32_0 : i32, i32
  }
  func.func @transform_2(%arg0: i32, %arg1: i32) -> (i32, i32) {
    %0 = arith.muli %arg1, %arg0 : i32
    %c0_i32 = arith.constant 0 : i32
    %c0_i32_0 = arith.constant 0 : i32
    return %0, %c0_i32 : i32, i32
  }
  func.func @transform_3(%arg0: i32, %arg1: i32) -> (i32, i32) {
    %0 = arith.muli %arg1, %arg0 : i32
    %c0_i32 = arith.constant 0 : i32
    %c0_i32_0 = arith.constant 0 : i32
    return %c0_i32, %0 : i32, i32
  }
  func.func @transform_4(%arg0: i32, %arg1: i32) -> (i32, i32) {
    %0 = arith.muli %arg1, %arg0 : i32
    %c0_i32 = arith.constant 0 : i32
    %c0_i32_0 = arith.constant 0 : i32
    return %c0_i32, %0 : i32, i32
  }
}

</mosaic_0001>

<llo_original>
// kernel: tpu_custom_call.1
$region0: #{tpu_custom_call.1}
  #allocation0 [shape = 'u32[]', space=smem, size = 0x4, offset = 0x4, fixed_abs, tag = 'smem constant byte address 0x4 - core index']
  #allocation1 [shape = 'u32[144,128]{1,0:T(1,128)}', space=vmem, size = 0x12000, scoped, tag = 'internal scratch']
  #allocation2 [shape = 'f32[2,128]{1,0:T(2,128)}', space=vmem, size = 0x400, scoped, tag = 'scratch operand']
  %s0 = inlined_call_operand.hbm [shape: bf16[2,256], index: 0, kind: input, shape index: {}]
  %s1 = inlined_call_operand.hbm [shape: bf16[256,128], index: 1, kind: input, shape index: {}]
  %s2 = inlined_call_operand.hbm [shape: bf16[256,128], index: 2, kind: input, shape index: {}]
  %s3 = inlined_call_operand.vmem [shape: f32[1,256], index: 3, kind: input, shape index: {}]
  %s4 = inlined_call_operand.hbm [shape: f32[2,256], index: 4, kind: output, shape index: {}]
  %s5 = sld [smem:[#allocation0]]
  $region73: #{tpu_custom_call.1} parent=0
    _
  %s7 = ssub.s32 1, %s5
  %s8 = scalar_select 0, %s7, %s5
  $region1: #{tpu_custom_call.1} parent=0
    #allocation3 [shape = 'u8[2048]{0}', space=vmem, size = 0x800, scoped, tag = 'input window, operand 0']
    #allocation4 [shape = 's32[2]{0}', space=sflag, size = 0x8, scoped, tag = 'scoped memory for tpu_custom_call.1']
    #allocation5 [shape = 's32[2]{0}', space=sflag, size = 0x8, scoped, tag = 'scoped memory for tpu_custom_call.1']
    #allocation6 [shape = 'u8[131072]{0}', space=vmem, size = 0x20000, scoped, tag = 'input window, operand 1']
    #allocation7 [shape = 's32[2]{0}', space=sflag, size = 0x8, scoped, tag = 'scoped memory for tpu_custom_call.1']
    #allocation8 [shape = 'u8[131072]{0}', space=vmem, size = 0x20000, scoped, tag = 'input window, operand 2']
    #allocation9 [shape = 'u8[4096]{0}', space=vmem, size = 0x1000, scoped, tag = 'output window, operand 0']
    %9 = vsyncpa [#allocation4], 0
    %s10 = scalar_lea.sflag [#allocation4], 1
    %11 = vsyncpa %s10, 0
    %12 = vsyncpa [#allocation7], 0
    %s13 = scalar_lea.sflag [#allocation7], 1
    %14 = vsyncpa %s13, 0
    %15 = vsyncpa [#allocation5], 0
    %s16 = scalar_lea.sflag [#allocation5], 1
    %17 = vsyncpa %s16, 0
    loop: start=0, step=1, limit=4
    $region2: #{tpu_custom_call.1} parent=1 // loop_pre_header
      _
    $region3: #{tpu_custom_call.1} parent=1 // loop_header
      %s19 = sphi 0, %s23
      %p20 = scmp.ge.s32.totalorder %s19, 4
      %s26 = sphi 0, %s38
      %s27 = sphi 0, %s34
      %s28 = sphi 0, %s26
      %s29 = sphi 0, %s27
      %s30 = sphi 0, %s28
      %s31 = sphi 0, %s29
      %s45 = sphi 0, %s47
      %s48 = sphi 0, %s45
      %s49 = sphi 0, %s48
      %s65 = sphi 0, %s49
      %s75 = sphi 0, %s77
      %s78 = sphi 0, %s75
      %s79 = sphi 0, %s78
      %s95 = sphi 0, %s79
      %s103 = sphi 0, %s105
      %s106 = sphi 0, %s103
      %s107 = sphi 0, %s106
      %s123 = sphi 0, %s107
      %s131 = sphi 0, %s133
      %s134 = sphi 0, %s131
      %s135 = sphi 0, %s134
      %s151 = sphi 0, %s135
      %s159 = sphi 0, %s161
      %s162 = sphi 0, %s159
      %s163 = sphi 0, %s162
      %s179 = sphi 0, %s163
    $region4: #{tpu_custom_call.1} parent=1 // loop_header_branch
      %22 = sbr.rel (%p20) target = $region8
    $region5: #{tpu_custom_call.1} parent=1 // loop_body
      %s24 = ssub.s32 %s19, 1
      %s25 = ssub.s32 %s19, 2
      %s32 = sadd.s32 1, %s27
      %p33 = scmp.ge.s32.totalorder %s32, 1
      %s34 = scalar_select %p33, 0, %s32
      %s35 = sadd.s32 1, %s26
      %s36 = scalar_select %p33, %s35, %s26
      %p37 = scmp.ge.s32.totalorder %s36, 2
      %s38 = scalar_select %p37, 0, %s36
      %s39 = ssub.s32 1, %s26
      %s40 = smul.u32 %s27, %s39
      %s41 = ssub.s32 1, %s38
      %s42 = smul.u32 %s34, %s41
      %s43 = ssub.s32 %s40, %s42
      %p44 = scmp.eq.s32.totalorder %s43, 0
      %s46 = sadd.s32 %s45, 1
      %s47 = scalar_select %p44, %s45, %s46
      %p50 = pneg %p44
      %p51 = scmp.eq.s32.totalorder %s19, 1
      %p52 = por %p50, %p51
      %p53 = scmp.ne.s32.totalorder %s45, %s48
      %p54 = scmp.eq.s32.totalorder %s19, 0
      %p55 = por %p53, %p54
      %p56 = scmp.ne.s32.totalorder %s45, %s48
      %p57 = scmp.eq.s32.totalorder %s24, 1
      %p58 = por %p56, %p57
      %p59 = scmp.ne.s32.totalorder %s48, %s49
      %p60 = scmp.eq.s32.totalorder %s24, 0
      %p61 = por %p59, %p60
      %p62 = scmp.ne.s32.totalorder %s48, %s49
      %p63 = scmp.eq.s32.totalorder %s25, 1
      %p64 = por %p62, %p63
      %p66 = scmp.ne.s32.totalorder %s49, %s65
      %p67 = scmp.eq.s32.totalorder %s25, 0
      %p68 = por %p66, %p67
      %s69 = ssub.s32 1, %s26
      %s70 = smul.u32 %s27, %s69
      %s71 = ssub.s32 1, %s38
      %s72 = smul.u32 %s34, %s71
      %s73 = ssub.s32 %s70, %s72
      %p74 = scmp.eq.s32.totalorder %s73, 0
      %s76 = sadd.s32 %s75, 1
      %s77 = scalar_select %p74, %s75, %s76
      %p80 = pneg %p74
      %p81 = scmp.eq.s32.totalorder %s19, 1
      %p82 = por %p80, %p81
      %p83 = scmp.ne.s32.totalorder %s75, %s78
      %p84 = scmp.eq.s32.totalorder %s19, 0
      %p85 = por %p83, %p84
      %p86 = scmp.ne.s32.totalorder %s75, %s78
      %p87 = scmp.eq.s32.totalorder %s24, 1
      %p88 = por %p86, %p87
      %p89 = scmp.ne.s32.totalorder %s78, %s79
      %p90 = scmp.eq.s32.totalorder %s24, 0
      %p91 = por %p89, %p90
      %p92 = scmp.ne.s32.totalorder %s78, %s79
      %p93 = scmp.eq.s32.totalorder %s25, 1
      %p94 = por %p92, %p93
      %p96 = scmp.ne.s32.totalorder %s79, %s95
      %p97 = scmp.eq.s32.totalorder %s25, 0
      %p98 = por %p96, %p97
      %s99 = smul.u32 %s27, %s26
      %s100 = smul.u32 %s34, %s38
      %s101 = ssub.s32 %s99, %s100
      %p102 = scmp.eq.s32.totalorder %s101, 0
      %s104 = sadd.s32 %s103, 1
      %s105 = scalar_select %p102, %s103, %s104
      %p108 = pneg %p102
      %p109 = scmp.eq.s32.totalorder %s19, 1
      %p110 = por %p108, %p109
      %p111 = scmp.ne.s32.totalorder %s103, %s106
      %p112 = scmp.eq.s32.totalorder %s19, 0
      %p113 = por %p111, %p112
      %p114 = scmp.ne.s32.totalorder %s103, %s106
      %p115 = scmp.eq.s32.totalorder %s24, 1
      %p116 = por %p114, %p115
      %p117 = scmp.ne.s32.totalorder %s106, %s107
      %p118 = scmp.eq.s32.totalorder %s24, 0
      %p119 = por %p117, %p118
      %p120 = scmp.ne.s32.totalorder %s106, %s107
      %p121 = scmp.eq.s32.totalorder %s25, 1
      %p122 = por %p120, %p121
      %p124 = scmp.ne.s32.totalorder %s107, %s123
      %p125 = scmp.eq.s32.totalorder %s25, 0
      %p126 = por %p124, %p125
      %s127 = smul.u32 %s27, %s26
      %s128 = smul.u32 %s34, %s38
      %s129 = ssub.s32 %s127, %s128
      %p130 = scmp.eq.s32.totalorder %s129, 0
      %s132 = sadd.s32 %s131, 1
      %s133 = scalar_select %p130, %s131, %s132
      %p136 = pneg %p130
      %p137 = scmp.eq.s32.totalorder %s19, 1
      %p138 = por %p136, %p137
      %p139 = scmp.ne.s32.totalorder %s131, %s134
      %p140 = scmp.eq.s32.totalorder %s19, 0
      %p141 = por %p139, %p140
      %p142 = scmp.ne.s32.totalorder %s131, %s134
      %p143 = scmp.eq.s32.totalorder %s24, 1
      %p144 = por %p142, %p143
      %p145 = scmp.ne.s32.totalorder %s134, %s135
      %p146 = scmp.eq.s32.totalorder %s24, 0
      %p147 = por %p145, %p146
      %p148 = scmp.ne.s32.totalorder %s134, %s135
      %p149 = scmp.eq.s32.totalorder %s25, 1
      %p150 = por %p148, %p149
      %p152 = scmp.ne.s32.totalorder %s135, %s151
      %p153 = scmp.eq.s32.totalorder %s25, 0
      %p154 = por %p152, %p153
      %s155 = smul.u32 %s27, %s26
      %s156 = smul.u32 %s34, %s38
      %s157 = ssub.s32 %s155, %s156
      %p158 = scmp.eq.s32.totalorder %s157, 0
      %s160 = sadd.s32 %s159, 1
      %s161 = scalar_select %p158, %s159, %s160
      %p164 = pneg %p158
      %p165 = scmp.eq.s32.totalorder %s19, 1
      %p166 = por %p164, %p165
      %p167 = scmp.ne.s32.totalorder %s159, %s162
      %p168 = scmp.eq.s32.totalorder %s19, 0
      %p169 = por %p167, %p168
      %p170 = scmp.ne.s32.totalorder %s159, %s162
      %p171 = scmp.eq.s32.totalorder %s24, 1
      %p172 = por %p170, %p171
      %p173 = scmp.ne.s32.totalorder %s162, %s163
      %p174 = scmp.eq.s32.totalorder %s24, 0
      %p175 = por %p173, %p174
      %p176 = scmp.ne.s32.totalorder %s162, %s163
      %p177 = scmp.eq.s32.totalorder %s25, 1
      %p178 = por %p176, %p177
      %p180 = scmp.ne.s32.totalorder %s163, %s179
      %p181 = scmp.eq.s32.totalorder %s25, 0
      %p182 = por %p180, %p181
      %p183 = scmp.le.s32.totalorder 1, %s19
      %p184 = scmp.lt.s32.totalorder %s19, 3
      %p185 = pnand %p183, %p184
      %p186 = pneg %p185
      // Predicated region
      $region9: #{tpu_custom_call.1} parent=5 // pred_check
        _
      $region10: #{tpu_custom_call.1} parent=5 // pred_check_branch
        %188 = sbr.rel (%p185) target = $region12
      $region11: #{tpu_custom_call.1} parent=5 // pred_region
        %s189 = ssub.s32 %s19, 1
      $region12: #{tpu_custom_call.1} parent=5 // pred_fallthru
        _
      %p190 = scmp.lt.s32.totalorder %s19, 2
      // Predicated region
      $region13: #{tpu_custom_call.1} parent=5 // pred_check
        %p191 = pneg %p190
      $region14: #{tpu_custom_call.1} parent=5 // pred_check_branch
        %193 = sbr.rel (%p191) target = $region16
      $region15: #{tpu_custom_call.1} parent=5 // pred_region
        // Predicated region
        $region17: #{tpu_custom_call.1} parent=15 // pred_check
          %p194 = pneg %p55
        $region18: #{tpu_custom_call.1} parent=15 // pred_check_branch
          %196 = sbr.rel (%p194) target = $region20
        $region19: #{tpu_custom_call.1} parent=15 // pred_region
          %s197 = sand.u32 %s45, 1
          %s198 = scalar_lea.sflag [#allocation4], %s197
          %s199 = sand.u32 %s45, 1
          %s200 = smul.addr %s199, 2
          %s201 = scalar_lea.vmem [#allocation3], %s200
          %s202 = ssub.s32 1, %s26
          %s203 = smul.u32 %s27, %s202
          %s204 = smul.u32 2, %s203
          %s206 = ssub.s32 32, 32
          %207 = vsyncadd %s198, %s206
          %s208 = smul.addr %s204, 16
          %s209 = scalar_lea.hbm %s0, %s208
          %s211 = sshll.u32 %s201, 4
          %s212 = int_to_ptr.vmem [resolvable:$true] %s211
          %214 = dma.hbm_to_vmem [thread:$0]  %s209, 32, %s212, %s198
        $region20: #{tpu_custom_call.1} parent=15 // pred_fallthru
          _
        // Predicated region
        $region21: #{tpu_custom_call.1} parent=15 // pred_check
          %p215 = pneg %p85
        $region22: #{tpu_custom_call.1} parent=15 // pred_check_branch
          %217 = sbr.rel (%p215) target = $region24
        $region23: #{tpu_custom_call.1} parent=15 // pred_region
          %s218 = sand.u32 %s19, 1
          %s219 = scalar_lea.sflag [#allocation7], %s218
          %s220 = sand.u32 %s75, 1
          %s221 = smul.addr %s220, 128
          %s222 = scalar_lea.vmem [#allocation6], %s221
          %s223 = ssub.s32 1, %s26
          %s224 = smul.u32 %s27, %s223
          %s225 = smul.u32 32, %s224
          %s227 = ssub.s32 2048, 2048
          %228 = vsyncadd %s219, %s227
          %s229 = smul.addr %s225, 64
          %s230 = scalar_lea.hbm %s1, %s229
          %s231 = sshll.u32 %s222, 4
          %s232 = int_to_ptr.vmem [resolvable:$true] %s231
          %237 = dma.hbm_to_vmem [thread:$0]  %s230, 2048, %s232, %s219, 64, 64, 4
        $region24: #{tpu_custom_call.1} parent=15 // pred_fallthru
          _
        // Predicated region
        $region25: #{tpu_custom_call.1} parent=15 // pred_check
          %p238 = pneg %p113
        $region26: #{tpu_custom_call.1} parent=15 // pred_check_branch
          %240 = sbr.rel (%p238) target = $region28
        $region27: #{tpu_custom_call.1} parent=15 // pred_region
          %s241 = sand.u32 %s19, 1
          %s242 = scalar_lea.sflag [#allocation7], %s241
          %s243 = sand.u32 %s103, 1
          %s244 = smul.addr %s243, 128
          %s245 = scalar_lea.vmem [#allocation8], %s244
          %s246 = smul.u32 %s27, %s26
          %s247 = smul.u32 32, %s246
          %s249 = ssub.s32 2048, 2048
          %250 = vsyncadd %s242, %s249
          %s251 = smul.addr %s247, 64
          %s252 = scalar_lea.hbm %s2, %s251
          %s253 = sshll.u32 %s245, 4
          %s254 = int_to_ptr.vmem [resolvable:$true] %s253
          %259 = dma.hbm_to_vmem [thread:$0]  %s252, 2048, %s254, %s242, 64, 64, 4
        $region28: #{tpu_custom_call.1} parent=15 // pred_fallthru
          _
        // Predicated region
        $region29: #{tpu_custom_call.1} parent=15 // pred_check
          %p260 = pneg %p141
        $region30: #{tpu_custom_call.1} parent=15 // pred_check_branch
          %262 = sbr.rel (%p260) target = $region32
        $region31: #{tpu_custom_call.1} parent=15 // pred_region
          %s263 = smul.u32 %s27, %s26
          %s264 = smul.u32 2, %s263
          %p265 = scmp.lt.s32.totalorder %s264, 1
          %s266 = scalar_select %p265, %s264, 1
          %s267 = scalar_lea.vmem %s3, %s266
          %s268 = smul.u32 %s27, %s26
          %s269 = smul.u32 2, %s268
        $region32: #{tpu_custom_call.1} parent=15 // pred_fallthru
          _
      $region16: #{tpu_custom_call.1} parent=5 // pred_fallthru
        _
      %p270 = scmp.le.s32.totalorder 1, %s19
      %p271 = scmp.lt.s32.totalorder %s19, 3
      %p272 = pnand %p270, %p271
      %p273 = pneg %p272
      // Predicated region
      $region33: #{tpu_custom_call.1} parent=5 // pred_check
        _
      $region34: #{tpu_custom_call.1} parent=5 // pred_check_branch
        %275 = sbr.rel (%p272) target = $region36
      $region35: #{tpu_custom_call.1} parent=5 // pred_region
        %s276 = ssub.s32 %s19, 1
        %s277 = sand.u32 %s48, 1
        %s278 = scalar_lea.sflag [#allocation4], %s277
        %s279 = sand.u32 %s48, 1
        %s280 = smul.addr %s279, 2
        %s281 = scalar_lea.vmem [#allocation3], %s280
        // Predicated region
        $region37: #{tpu_custom_call.1} parent=35 // pred_check
          %p282 = pneg %p61
        $region38: #{tpu_custom_call.1} parent=35 // pred_check_branch
          %284 = sbr.rel (%p282) target = $region40
        $region39: #{tpu_custom_call.1} parent=35 // pred_region
          %285 = dma.done %s278, 32
        $region40: #{tpu_custom_call.1} parent=35 // pred_fallthru
          _
        %s286 = sand.u32 %s24, 1
        %s287 = scalar_lea.sflag [#allocation7], %s286
        %s288 = sand.u32 %s78, 1
        %s289 = smul.addr %s288, 128
        %s290 = scalar_lea.vmem [#allocation6], %s289
        // Predicated region
        $region41: #{tpu_custom_call.1} parent=35 // pred_check
          %p291 = pneg %p91
        $region42: #{tpu_custom_call.1} parent=35 // pred_check_branch
          %293 = sbr.rel (%p291) target = $region44
        $region43: #{tpu_custom_call.1} parent=35 // pred_region
          %294 = dma.done %s287, 2048
        $region44: #{tpu_custom_call.1} parent=35 // pred_fallthru
          _
        %s295 = sand.u32 %s24, 1
        %s296 = scalar_lea.sflag [#allocation7], %s295
        %s297 = sand.u32 %s106, 1
        %s298 = smul.addr %s297, 128
        %s299 = scalar_lea.vmem [#allocation8], %s298
        // Predicated region
        $region45: #{tpu_custom_call.1} parent=35 // pred_check
          %p300 = pneg %p119
        $region46: #{tpu_custom_call.1} parent=35 // pred_check_branch
          %302 = sbr.rel (%p300) target = $region48
        $region47: #{tpu_custom_call.1} parent=35 // pred_region
          %303 = dma.done %s296, 2048
        $region48: #{tpu_custom_call.1} parent=35 // pred_fallthru
          _
        %s304 = sand.u32 %s48, 1
        %s305 = scalar_lea.sflag [#allocation4], %s304
        %s306 = sand.u32 %s48, 1
        %s307 = smul.addr %s306, 2
        %s308 = scalar_lea.vmem [#allocation3], %s307
        %p309 = pneg %p61
        %p310 = pneg %p58
        %s311 = sand.u32 %s24, 1
        %s312 = scalar_lea.sflag [#allocation7], %s311
        %s313 = sand.u32 %s78, 1
        %s314 = smul.addr %s313, 128
        %s315 = scalar_lea.vmem [#allocation6], %s314
        %p316 = pneg %p91
        %p317 = pneg %p88
        %s318 = sand.u32 %s24, 1
        %s319 = scalar_lea.sflag [#allocation7], %s318
        %s320 = sand.u32 %s106, 1
        %s321 = smul.addr %s320, 128
        %s322 = scalar_lea.vmem [#allocation8], %s321
        %p323 = pneg %p119
        %p324 = pneg %p116
        %s325 = smul.u32 %s29, %s28
        %s326 = smul.u32 2, %s325
        %p327 = scmp.lt.s32.totalorder %s326, 1
        %s328 = scalar_select %p327, %s326, 1
        %s329 = scalar_lea.vmem %s3, %s328
        %p330 = pneg %p147
        %p331 = pneg %p144
        %p332 = pneg %p175
        %p333 = pneg %p172
        %s334 = sand.u32 %s162, 1
        %s335 = scalar_lea.sflag [#allocation5], %s334
        %s336 = sand.u32 %s162, 1
        %s337 = smul.addr %s336, 4
        %s338 = scalar_lea.vmem [#allocation9], %s337
        %s339 = ssub.s32 1, %s28
        %s340 = smul.u32 %s29, %s339
        %s341 = smul.u32 2, %s340
        %s342 = ssub.s32 1, %s28
        %s343 = smul.u32 %s29, %s342
        %s344 = smul.u32 32, %s343
        %s345 = smul.u32 %s29, %s28
        %s346 = smul.u32 32, %s345
        %s347 = smul.u32 %s29, %s28
        %s348 = smul.u32 2, %s347
        %p349 = scmp.lt.s32.totalorder %s348, 1
        %s350 = scalar_select %p349, %s348, 1
        %s351 = scalar_lea.vmem %s3, %s350
        %s352 = smul.u32 %s29, %s28
        %s353 = smul.u32 2, %s352
        %s354 = smul.u32 %s29, %s28
        %s355 = smul.u32 2, %s354
        %p357 = scmp.eq.s32.totalorder %s28, 0
        %p358 = scmp.eq.s32.totalorder %s29, 0
        %p359 = pnand %p357, %p358
        %p360 = pneg %p359
        // Predicated region
        $region49: #{tpu_custom_call.1} parent=35 // pred_check
          _
        $region50: #{tpu_custom_call.1} parent=35 // pred_check_branch
          %362 = sbr.rel (%p359) target = $region52
        $region51: #{tpu_custom_call.1} parent=35 // pred_region
          %363 = vst [vmem:[#allocation2] sm:$0x3] 0.0
        $region52: #{tpu_custom_call.1} parent=35 // pred_fallthru
          _
        // Predicated region
        $region53: #{tpu_custom_call.1} parent=35 // pred_check
          %p364 = pneg %p357
        $region54: #{tpu_custom_call.1} parent=35 // pred_check_branch
          %366 = sbr.rel (%p364) target = $region56
        $region55: #{tpu_custom_call.1} parent=35 // pred_region
          %v367 = vld [vmem:[#allocation2] sm:$0x3]
          %v368 = vld [vmem:[%s281] sm:$0x3]
          %v369 = vld [vmem:[%s290] sm:$0xf]
          %v370 = vld [vmem:[%s290 + $0x4] sm:$0xf]
          %v371 = vld [vmem:[%s290 + $0x8] sm:$0xf]
          %v372 = vld [vmem:[%s290 + $0xc] sm:$0xf]
          %v373 = vld [vmem:[%s290 + $0x10] sm:$0xf]
          %v374 = vld [vmem:[%s290 + $0x14] sm:$0xf]
          %v375 = vld [vmem:[%s290 + $0x18] sm:$0xf]
          %v376 = vld [vmem:[%s290 + $0x1c] sm:$0xf]
          %v377 = vld [vmem:[%s290 + $0x20] sm:$0xf]
          %v378 = vld [vmem:[%s290 + $0x24] sm:$0xf]
          %v379 = vld [vmem:[%s290 + $0x28] sm:$0xf]
          %v380 = vld [vmem:[%s290 + $0x2c] sm:$0xf]
          %v381 = vld [vmem:[%s290 + $0x30] sm:$0xf]
          %v382 = vld [vmem:[%s290 + $0x34] sm:$0xf]
          %v383 = vld [vmem:[%s290 + $0x38] sm:$0xf]
          %v384 = vld [vmem:[%s290 + $0x3c] sm:$0xf]
          %v385 = vld [vmem:[%s290 + $0x40] sm:$0xf]
          %v386 = vld [vmem:[%s290 + $0x44] sm:$0xf]
          %v387 = vld [vmem:[%s290 + $0x48] sm:$0xf]
          %v388 = vld [vmem:[%s290 + $0x4c] sm:$0xf]
          %v389 = vld [vmem:[%s290 + $0x50] sm:$0xf]
          %v390 = vld [vmem:[%s290 + $0x54] sm:$0xf]
          %v391 = vld [vmem:[%s290 + $0x58] sm:$0xf]
          %v392 = vld [vmem:[%s290 + $0x5c] sm:$0xf]
          %v393 = vld [vmem:[%s290 + $0x60] sm:$0xf]
          %v394 = vld [vmem:[%s290 + $0x64] sm:$0xf]
          %v395 = vld [vmem:[%s290 + $0x68] sm:$0xf]
          %v396 = vld [vmem:[%s290 + $0x6c] sm:$0xf]
          %v397 = vld [vmem:[%s290 + $0x70] sm:$0xf]
          %v398 = vld [vmem:[%s290 + $0x74] sm:$0xf]
          %v399 = vld [vmem:[%s290 + $0x78] sm:$0xf]
          %v400 = vld [vmem:[%s290 + $0x7c] sm:$0xf]
          %v403 = vunpack.c.l.s4 1966171168
          %v404 = vunpack.c.0.s8 %v403
          %v405 = vlaneseq
          %v406 = vshrl.u32 %v405, 7
          %v407 = vsub.s32 %v404, %v406
          %v408 = vrot.slane %v368, %v407
          %v409 = vcombine.high %v408, %v408
          %v411 = vunpack.c.l.s4 1966171168
          %v412 = vunpack.c.0.s8 %v411
          %v413 = vlaneseq
          %v414 = vshrl.u32 %v413, 7
          %v415 = vsub.s32 %v412, %v414
          %v416 = vrot.slane %v408, %v415
          %v418 = vunpack.c.l.s4 1966171168
          %v419 = vunpack.c.0.s8 %v418
          %v420 = vlaneseq
          %v421 = vshrl.u32 %v420, 7
          %v422 = vsub.s32 %v419, %v421
          %v423 = vrot.slane %v409, %v422
          %v458 = vunpack.c.l.b16 %v369
          %v459 = vunpack.c.l.b16 %v370
          %v460 = vunpack.c.l.b16 %v371
          %v461 = vunpack.c.l.b16 %v372
          %v462 = vunpack.c.l.b16 %v373
          %v463 = vunpack.c.l.b16 %v374
          %v464 = vunpack.c.l.b16 %v375
          %v465 = vunpack.c.l.b16 %v376
          %v466 = vunpack.c.l.b16 %v377
          %v467 = vunpack.c.l.b16 %v378
          %v468 = vunpack.c.l.b16 %v379
          %v469 = vunpack.c.l.b16 %v380
          %v470 = vunpack.c.l.b16 %v381
          %v471 = vunpack.c.l.b16 %v382
          %v472 = vunpack.c.l.b16 %v383
          %v473 = vunpack.c.l.b16 %v384
          %v474 = vunpack.c.l.b16 %v385
          %v475 = vunpack.c.l.b16 %v386
          %v476 = vunpack.c.l.b16 %v387
          %v477 = vunpack.c.l.b16 %v388
          %v478 = vunpack.c.l.b16 %v389
          %v479 = vunpack.c.l.b16 %v390
          %v480 = vunpack.c.l.b16 %v391
          %v481 = vunpack.c.l.b16 %v392
          %v482 = vunpack.c.l.b16 %v393
          %v483 = vunpack.c.l.b16 %v394
          %v484 = vunpack.c.l.b16 %v395
          %v485 = vunpack.c.l.b16 %v396
          %v486 = vunpack.c.l.b16 %v397
          %v487 = vunpack.c.l.b16 %v398
          %v488 = vunpack.c.l.b16 %v399
          %v489 = vunpack.c.l.b16 %v400
          %v490 = vpack.c.b16 %v459, %v458
          %v491 = vpack.c.b16 %v461, %v460
          %v492 = vpack.c.b16 %v463, %v462
          %v493 = vpack.c.b16 %v465, %v464
          %v494 = vpack.c.b16 %v467, %v466
          %v495 = vpack.c.b16 %v469, %v468
          %v496 = vpack.c.b16 %v471, %v470
          %v497 = vpack.c.b16 %v473, %v472
          %v498 = vpack.c.b16 %v475, %v474
          %v499 = vpack.c.b16 %v477, %v476
          %v500 = vpack.c.b16 %v479, %v478
          %v501 = vpack.c.b16 %v481, %v480
          %v502 = vpack.c.b16 %v483, %v482
          %v503 = vpack.c.b16 %v485, %v484
          %v504 = vpack.c.b16 %v487, %v486
          %v505 = vpack.c.b16 %v489, %v488
          %522 = vmatprep.subr.bf16.mxu0 0
          %523 = vmatpush1.bf16.msra.mxu0 %v490
          %524 = vmatprep.subr.bf16.mxu0 0
          %525 = vmatpush1.bf16.msra.mxu0 %v491
          %526 = vmatprep.subr.bf16.mxu0 0
          %527 = vmatpush1.bf16.msra.mxu0 %v492
          %528 = vmatprep.subr.bf16.mxu0 0
          %529 = vmatpush1.bf16.msra.mxu0 %v493
          %530 = vmatprep.subr.bf16.mxu0 0
          %531 = vmatpush1.bf16.msra.mxu0 %v494
          %532 = vmatprep.subr.bf16.mxu0 0
          %533 = vmatpush1.bf16.msra.mxu0 %v495
          %534 = vmatprep.subr.bf16.mxu0 0
          %535 = vmatpush1.bf16.msra.mxu0 %v496
          %536 = vmatprep.subr.bf16.mxu0 0
          %537 = vmatpush1.bf16.msra.mxu0 %v497
          %538 = vmatprep.subr.bf16.mxu0 0
          %539 = vmatpush1.bf16.msra.mxu0 %v498
          %540 = vmatprep.subr.bf16.mxu0 0
          %541 = vmatpush1.bf16.msra.mxu0 %v499
          %542 = vmatprep.subr.bf16.mxu0 0
          %543 = vmatpush1.bf16.msra.mxu0 %v500
          %544 = vmatprep.subr.bf16.mxu0 0
          %545 = vmatpush1.bf16.msra.mxu0 %v501
          %546 = vmatprep.subr.bf16.mxu0 0
          %547 = vmatpush1.bf16.msra.mxu0 %v502
          %548 = vmatprep.subr.bf16.mxu0 0
          %549 = vmatpush1.bf16.msra.mxu0 %v503
          %550 = vmatprep.subr.bf16.mxu0 0
          %551 = vmatpush1.bf16.msra.mxu0 %v504
          %552 = vmatprep.subr.bf16.mxu0 0
          %553 = vmatpush1.bf16.msra.mxu0 %v505
          %554 = vmatprep.mubr.bf16.mxu0 %v423
          %555 = vmatmul.mubr.bf16.gmra.mrb[0].mxu0 %v416
          %v556 = vpop.f32.mrb[0].mxu0
          %v557 = vadd.f32 0.0, %v556
          %v558 = vpop.f32.mrb[0].mxu0
          %v559 = vpop.f32.mrb[0].mxu0
          %v560 = vpop.f32.mrb[0].mxu0
          %561 = vdwg.mxu0
          %v562 = vadd.f32 %v367, %v557
          %563 = vst [vmem:[#allocation2] sm:$0x3] %v562
        $region56: #{tpu_custom_call.1} parent=35 // pred_fallthru
          _
        %p564 = scmp.eq.s32.totalorder %s28, 1
        // Predicated region
        $region57: #{tpu_custom_call.1} parent=35 // pred_check
          %p565 = pneg %p564
        $region58: #{tpu_custom_call.1} parent=35 // pred_check_branch
          %567 = sbr.rel (%p565) target = $region60
        $region59: #{tpu_custom_call.1} parent=35 // pred_region
          %v568 = vld [vmem:[#allocation2] sm:$0x3]
          %v569 = vpack.c.bf16 %v568, %v568
          %v570 = vld [vmem:[%s299] sm:$0xf]
          %v571 = vld [vmem:[%s299 + $0x4] sm:$0xf]
          %v572 = vld [vmem:[%s299 + $0x8] sm:$0xf]
          %v573 = vld [vmem:[%s299 + $0xc] sm:$0xf]
          %v574 = vld [vmem:[%s299 + $0x10] sm:$0xf]
          %v575 = vld [vmem:[%s299 + $0x14] sm:$0xf]
          %v576 = vld [vmem:[%s299 + $0x18] sm:$0xf]
          %v577 = vld [vmem:[%s299 + $0x1c] sm:$0xf]
          %v578 = vld [vmem:[%s299 + $0x20] sm:$0xf]
          %v579 = vld [vmem:[%s299 + $0x24] sm:$0xf]
          %v580 = vld [vmem:[%s299 + $0x28] sm:$0xf]
          %v581 = vld [vmem:[%s299 + $0x2c] sm:$0xf]
          %v582 = vld [vmem:[%s299 + $0x30] sm:$0xf]
          %v583 = vld [vmem:[%s299 + $0x34] sm:$0xf]
          %v584 = vld [vmem:[%s299 + $0x38] sm:$0xf]
          %v585 = vld [vmem:[%s299 + $0x3c] sm:$0xf]
          %v586 = vld [vmem:[%s299 + $0x40] sm:$0xf]
          %v587 = vld [vmem:[%s299 + $0x44] sm:$0xf]
          %v588 = vld [vmem:[%s299 + $0x48] sm:$0xf]
          %v589 = vld [vmem:[%s299 + $0x4c] sm:$0xf]
          %v590 = vld [vmem:[%s299 + $0x50] sm:$0xf]
          %v591 = vld [vmem:[%s299 + $0x54] sm:$0xf]
          %v592 = vld [vmem:[%s299 + $0x58] sm:$0xf]
          %v593 = vld [vmem:[%s299 + $0x5c] sm:$0xf]
          %v594 = vld [vmem:[%s299 + $0x60] sm:$0xf]
          %v595 = vld [vmem:[%s299 + $0x64] sm:$0xf]
          %v596 = vld [vmem:[%s299 + $0x68] sm:$0xf]
          %v597 = vld [vmem:[%s299 + $0x6c] sm:$0xf]
          %v598 = vld [vmem:[%s299 + $0x70] sm:$0xf]
          %v599 = vld [vmem:[%s299 + $0x74] sm:$0xf]
          %v600 = vld [vmem:[%s299 + $0x78] sm:$0xf]
          %v601 = vld [vmem:[%s299 + $0x7c] sm:$0xf]
          %v602 = vld [vmem:[%s351] sm:$0x3]
          %v604 = vlaneseq
          %v605 = vshrl.u32 %v604, 7
          %v606 = vsub.s32 0, %v605
          %v607 = vrot.slane %v602, %v606
          %v608 = vlaneseq
          %v609 = vshrl.u32 %v608, 7
          %v610 = vsub.s32 1, %v609
          %v611 = vrot.slane %v602, %v610
          %v646 = vunpack.c.l.b16 %v570
          %v647 = vunpack.c.l.b16 %v571
          %v648 = vunpack.c.l.b16 %v572
          %v649 = vunpack.c.l.b16 %v573
          %v650 = vunpack.c.l.b16 %v574
          %v651 = vunpack.c.l.b16 %v575
          %v652 = vunpack.c.l.b16 %v576
          %v653 = vunpack.c.l.b16 %v577
          %v654 = vunpack.c.l.b16 %v578
          %v655 = vunpack.c.l.b16 %v579
          %v656 = vunpack.c.l.b16 %v580
          %v657 = vunpack.c.l.b16 %v581
          %v658 = vunpack.c.l.b16 %v582
          %v659 = vunpack.c.l.b16 %v583
          %v660 = vunpack.c.l.b16 %v584
          %v661 = vunpack.c.l.b16 %v585
          %v662 = vunpack.c.l.b16 %v586
          %v663 = vunpack.c.l.b16 %v587
          %v664 = vunpack.c.l.b16 %v588
          %v665 = vunpack.c.l.b16 %v589
          %v666 = vunpack.c.l.b16 %v590
          %v667 = vunpack.c.l.b16 %v591
          %v668 = vunpack.c.l.b16 %v592
          %v669 = vunpack.c.l.b16 %v593
          %v670 = vunpack.c.l.b16 %v594
          %v671 = vunpack.c.l.b16 %v595
          %v672 = vunpack.c.l.b16 %v596
          %v673 = vunpack.c.l.b16 %v597
          %v674 = vunpack.c.l.b16 %v598
          %v675 = vunpack.c.l.b16 %v599
          %v676 = vunpack.c.l.b16 %v600
          %v677 = vunpack.c.l.b16 %v601
          %v678 = vpack.c.b16 %v647, %v646
          %v679 = vpack.c.b16 %v649, %v648
          %v680 = vpack.c.b16 %v651, %v650
          %v681 = vpack.c.b16 %v653, %v652
          %v682 = vpack.c.b16 %v655, %v654
          %v683 = vpack.c.b16 %v657, %v656
          %v684 = vpack.c.b16 %v659, %v658
          %v685 = vpack.c.b16 %v661, %v660
          %v686 = vpack.c.b16 %v663, %v662
          %v687 = vpack.c.b16 %v665, %v664
          %v688 = vpack.c.b16 %v667, %v666
          %v689 = vpack.c.b16 %v669, %v668
          %v690 = vpack.c.b16 %v671, %v670
          %v691 = vpack.c.b16 %v673, %v672
          %v692 = vpack.c.b16 %v675, %v674
          %v693 = vpack.c.b16 %v677, %v676
          %710 = vmatprep.subr.bf16.mxu0 0
          %711 = vmatpush1.bf16.xpose.msra.mxu0 %v678
          %712 = vmatprep.subr.bf16.mxu0 0
          %713 = vmatpush1.bf16.xpose.msra.mxu0 %v679
          %714 = vmatprep.subr.bf16.mxu0 0
          %715 = vmatpush1.bf16.xpose.msra.mxu0 %v680
          %716 = vmatprep.subr.bf16.mxu0 0
          %717 = vmatpush1.bf16.xpose.msra.mxu0 %v681
          %718 = vmatprep.subr.bf16.mxu0 0
          %719 = vmatpush1.bf16.xpose.msra.mxu0 %v682
          %720 = vmatprep.subr.bf16.mxu0 0
          %721 = vmatpush1.bf16.xpose.msra.mxu0 %v683
          %722 = vmatprep.subr.bf16.mxu0 0
          %723 = vmatpush1.bf16.xpose.msra.mxu0 %v684
          %724 = vmatprep.subr.bf16.mxu0 0
          %725 = vmatpush1.bf16.xpose.msra.mxu0 %v685
          %726 = vmatprep.subr.bf16.mxu0 0
          %727 = vmatpush1.bf16.xpose.msra.mxu0 %v686
          %728 = vmatprep.subr.bf16.mxu0 0
          %729 = vmatpush1.bf16.xpose.msra.mxu0 %v687
          %730 = vmatprep.subr.bf16.mxu0 0
          %731 = vmatpush1.bf16.xpose.msra.mxu0 %v688
          %732 = vmatprep.subr.bf16.mxu0 0
          %733 = vmatpush1.bf16.xpose.msra.mxu0 %v689
          %734 = vmatprep.subr.bf16.mxu0 0
          %735 = vmatpush1.bf16.xpose.msra.mxu0 %v690
          %736 = vmatprep.subr.bf16.mxu0 0
          %737 = vmatpush1.bf16.xpose.msra.mxu0 %v691
          %738 = vmatprep.subr.bf16.mxu0 0
          %739 = vmatpush1.bf16.xpose.msra.mxu0 %v692
          %740 = vmatprep.subr.bf16.mxu0 0
          %741 = vmatpush1.bf16.xpose.msra.mxu0 %v693
          %742 = vmatprep.mubr.bf16.mxu0 0
          %743 = vmatmul.mubr.bf16.gmra.mrb[0].mxu0 %v569
          %v744 = vpop.f32.mrb[0].mxu0
          %v745 = vadd.f32 %v607, %v744
          %v746 = vpop.f32.mrb[0].mxu0
          %v747 = vadd.f32 %v611, %v746
          %v748 = vpop.f32.mrb[0].mxu0
          %v749 = vpop.f32.mrb[0].mxu0
          %750 = vdwg.mxu0
          %v753 = vcombine.low %v745, %v747
          %v755 = vunpack.c.l.s4 1983009808
          %v756 = vunpack.c.0.s8 %v755
          %v757 = vlaneseq
          %v758 = vshrl.u32 %v757, 7
          %v759 = vsub.s32 %v756, %v758
          %v760 = vrot.slane %v753, %v759
          %762 = vst [vmem:[%s338] sm:$0xf] %v760
        $region60: #{tpu_custom_call.1} parent=35 // pred_fallthru
          _
        %s763 = sand.u32 %s162, 1
        %s764 = scalar_lea.sflag [#allocation5], %s763
        %s765 = sand.u32 %s162, 1
        %s766 = smul.addr %s765, 4
        %s767 = scalar_lea.vmem [#allocation9], %s766
        // Predicated region
        $region61: #{tpu_custom_call.1} parent=35 // pred_check
          %p768 = pneg %p172
        $region62: #{tpu_custom_call.1} parent=35 // pred_check_branch
          %770 = sbr.rel (%p768) target = $region64
        $region63: #{tpu_custom_call.1} parent=35 // pred_region
          %s771 = smul.u32 %s29, %s28
          %s772 = smul.u32 2, %s771
          %s774 = ssub.s32 64, 64
          %775 = vsyncadd %s764, %s774
          %s776 = smul.addr %s772, 32
          %s777 = scalar_lea.hbm %s4, %s776
          %s779 = sshll.u32 %s767, 4
          %s780 = int_to_ptr.vmem [resolvable:$true] %s779
          %782 = dma.vmem_to_hbm [thread:$0]  %s780, 64, %s777, %s764
        $region64: #{tpu_custom_call.1} parent=35 // pred_fallthru
          _
      $region36: #{tpu_custom_call.1} parent=5 // pred_fallthru
        _
      %p783 = scmp.le.s32.totalorder 2, %s19
      // Predicated region
      $region65: #{tpu_custom_call.1} parent=5 // pred_check
        %p784 = pneg %p783
      $region66: #{tpu_custom_call.1} parent=5 // pred_check_branch
        %786 = sbr.rel (%p784) target = $region68
      $region67: #{tpu_custom_call.1} parent=5 // pred_region
        %s787 = ssub.s32 %s19, 2
        // Predicated region
        $region69: #{tpu_custom_call.1} parent=67 // pred_check
          %p788 = pneg %p178
        $region70: #{tpu_custom_call.1} parent=67 // pred_check_branch
          %790 = sbr.rel (%p788) target = $region72
        $region71: #{tpu_custom_call.1} parent=67 // pred_region
          %s791 = sand.u32 %s163, 1
          %s792 = scalar_lea.sflag [#allocation5], %s791
          %s793 = sand.u32 %s163, 1
          %s794 = smul.addr %s793, 4
          %s795 = scalar_lea.vmem [#allocation9], %s794
          %796 = dma.done %s792, 64
        $region72: #{tpu_custom_call.1} parent=67 // pred_fallthru
          _
      $region68: #{tpu_custom_call.1} parent=5 // pred_fallthru
        _
    $region6: #{tpu_custom_call.1} parent=1 // loop_footer
      %s23 = sadd.s32 1, %s19
    $region7: #{tpu_custom_call.1} parent=1 // loop_footer_branch
      %18 = sbr.rel target = $region3
    $region8: #{tpu_custom_call.1} parent=1 // loop_exit
      _
    %797 = vsyncpa [#allocation4], 1
    %s798 = scalar_lea.sflag [#allocation4], 1
    %799 = vsyncpa %s798, 1
    %800 = vsyncpa [#allocation7], 1
    %s801 = scalar_lea.sflag [#allocation7], 1
    %802 = vsyncpa %s801, 1
    %803 = vsyncpa [#allocation5], 1
    %s804 = scalar_lea.sflag [#allocation5], 1
    %805 = vsyncpa %s804, 1

</llo_original>
